<compile_context>
chip_gen: v5e
topology: v5e:2x2
jax: 0.10.0
libtpu: 0.0.40
codegen_flags: <defaults>
</compile_context>

<pallas_src>
import math

import jax
import jax.numpy as jnp
from jax.experimental import pallas as pl
from jax.experimental.pallas import tpu as pltpu

BN_EPS = 1e-5


def _round_up(n, m):
    return ((n + m - 1) // m) * m


def _tpu_defaults():
    """(vmem_limit_bytes, default_tile) chosen per TPU generation."""
    vmem_cap = 64 * 1024 * 1024
    try:
        info = pltpu.get_tpu_info()
        vmem_cap = getattr(info, "vmem_capacity_bytes", vmem_cap)
    except Exception:
        pass
    if vmem_cap >= 100 * 1024 * 1024:          # v5e / v6e: 128 MiB physical VMEM
        return 96 * 1024 * 1024, 1024
    return 48 * 1024 * 1024, 512               # v7x: 64 MiB physical VMEM


def _auto_tiles(n, tq, tk, default_t):
    """Pick 128-aligned q/kv tiles and the padded sequence length."""
    n128 = _round_up(n, 128)
    tq = default_t if tq is None else tq
    tk = default_t if tk is None else tk
    tq = _round_up(min(tq, n128), 128)
    tk = _round_up(min(tk, n128), 128)
    n_pad = _round_up(n, math.lcm(tq, tk))
    return tq, tk, n_pad


# ---------------------------------------------------------------------------
# Kernel 1: fused phi/g 1x1-conv projection (single bf16 MXU pass, lane-dense
# (tp, 2*Ci) writeback).
# ---------------------------------------------------------------------------
def _make_proj_kernel(compute_dtype):
    def kernel(x_ref, w_ref, b_ref, pg_ref):
        x = x_ref[0].astype(compute_dtype)                               # (TP, C)
        proj = jnp.dot(x, w_ref[...], preferred_element_type=jnp.float32)
        pg_ref[0] = (proj + b_ref[...]).astype(pg_ref.dtype)             # (TP, 2*Ci)
    return kernel


# ---------------------------------------------------------------------------
# Kernel 2: flash-style attention (theta computed in the prologue) + W conv
# (BN folded) + residual.
# ---------------------------------------------------------------------------
def _make_attn_kernel(n_real, n_pad, tk, compute_dtype):
    masked = n_pad != n_real

    def kernel(xq_ref, pg_ref, wth_ref, bth_ref, ww_ref, bw_ref, out_ref,
               m_sc, l_sc, acc_sc, th_sc):
        ki = pl.program_id(2)

        @pl.when(ki == 0)
        def _():
            m_sc[...] = jnp.full_like(m_sc, -jnp.inf)
            l_sc[...] = jnp.zeros_like(l_sc)
            acc_sc[...] = jnp.zeros_like(acc_sc)
            # Fused theta projection: x q-tile is already resident (residual).
            xq = xq_ref[0].astype(compute_dtype)                          # (TQ, C)
            th = jnp.dot(xq, wth_ref[...], preferred_element_type=jnp.float32)
            th_sc[...] = (th + bth_ref[...]).astype(th_sc.dtype)          # (TQ, Ci)

        ci = acc_sc.shape[-1]
        pg = pg_ref[0]                                                    # (TK, 2*Ci)
        ph = pg[:, :ci]                                                   # (TK, Ci)
        g = pg[:, ci:]                                                    # (TK, Ci)

        # Scores: contract both operands over the channel dim (no explicit .T).
        s = jax.lax.dot_general(th_sc[...], ph, (((1,), (1,)), ((), ())),
                                preferred_element_type=jnp.float32)       # (TQ, TK)
        if masked:
            col = ki * tk + jax.lax.broadcasted_iota(jnp.int32, (1, tk), 1)
            s = jnp.where(col < n_real, s, -jnp.inf)

        m_prev = m_sc[...]
        m_new = jnp.maximum(m_prev, jnp.max(s, axis=-1, keepdims=True))
        alpha = jnp.exp(m_prev - m_new)
        p = jnp.exp(s - m_new)                                            # (TQ, TK) f32
        l_sc[...] = alpha * l_sc[...] + jnp.sum(p, axis=-1, keepdims=True)
        acc_sc[...] = alpha * acc_sc[...] + jnp.dot(
            p.astype(compute_dtype), g, preferred_element_type=jnp.float32)
        m_sc[...] = m_new

        @pl.when(ki == pl.num_programs(2) - 1)
        def _():
            # Deferred softmax normalization (exact reciprocal: once per q-tile).
            y = (acc_sc[...] * pl.reciprocal(l_sc[...], approx=False)
                 ).astype(compute_dtype)                                  # (TQ, Ci)
            wy = jnp.dot(y, ww_ref[...],
                         preferred_element_type=jnp.float32) + bw_ref[...]  # (TQ, C)
            out_ref[0] = (wy + xq_ref[0].astype(jnp.float32)).astype(out_ref.dtype)

    return kernel


# ---------------------------------------------------------------------------
# Wrapper
# ---------------------------------------------------------------------------
def nonlocal_block(x_nchw, params, *, tile_q=None, tile_k=None,
                   compute_dtype=jnp.bfloat16):
    """x_nchw: (B, C, H, W) float32.  Returns (B, C, H, W) float32."""
    B, C, H, W = x_nchw.shape
    Ci = params["wg"].shape[1]
    N = H * W

    vmem_limit, default_t = _tpu_defaults()
    tq, tk, n_pad = _auto_tiles(N, tile_q, tile_k, default_t)
    tp = tq

    # NCHW -> (B, N, C) glue (plain JAX); residual path stays f32.
    x_flat = jnp.transpose(x_nchw, (0, 2, 3, 1)).reshape(B, N, C)
    if n_pad != N:
        x_flat = jnp.pad(x_flat, ((0, 0), (0, n_pad - N), (0, 0)))

    # Fused projection weight [phi | g] (bf16) + f32 bias.
    w_pg = jnp.concatenate([params["wph"], params["wg"]], axis=1).astype(compute_dtype)
    b_pg = jnp.concatenate([params["bph"], params["bg"]], axis=1).astype(jnp.float32)
    wth = params["wth"].astype(compute_dtype)
    bth = params["bth"].astype(jnp.float32)

    # Fold eval-mode BatchNorm into the W conv (numerically identical in eval).
    scale = params["gamma"].astype(jnp.float32) / jnp.sqrt(jnp.float32(1.0 + BN_EPS))
    ww_eff = (params["ww"] * scale).astype(compute_dtype)                 # (Ci, C)
    bw_eff = (params["bw"] * scale + params["beta"]).astype(jnp.float32)  # (1, C)

    cd_bytes = jnp.dtype(compute_dtype).itemsize

    # --- fused phi/g projection pass -----------------------------------------
    pg = pl.pallas_call(
        _make_proj_kernel(compute_dtype),
        out_shape=jax.ShapeDtypeStruct((B, n_pad, 2 * Ci), compute_dtype),
        grid_spec=pltpu.PrefetchScalarGridSpec(
            num_scalar_prefetch=0,
            grid=(B, n_pad // tp),
            in_specs=[
                pl.BlockSpec((1, tp, C), lambda b, i: (b, i, 0)),          # x
                pl.BlockSpec((C, 2 * Ci), lambda b, i: (0, 0)),            # fused W
                pl.BlockSpec((1, 2 * Ci), lambda b, i: (0, 0)),            # fused bias
            ],
            out_specs=pl.BlockSpec((1, tp, 2 * Ci), lambda b, i: (b, i, 0)),
        ),
        compiler_params=pltpu.CompilerParams(
            dimension_semantics=("parallel", "parallel"),
            vmem_limit_bytes=vmem_limit),
        cost_estimate=pl.CostEstimate(
            flops=int(2 * B * n_pad * C * 2 * Ci),
            transcendentals=0,
            bytes_accessed=int(B * n_pad * C * 4 + B * n_pad * 2 * Ci * cd_bytes),
        ),
    )(x_flat, w_pg, b_pg)

    # --- flash attention (+ theta prologue) + W conv + residual ---------------
    nq, nk = n_pad // tq, n_pad // tk
    out_flat = pl.pallas_call(
        _make_attn_kernel(N, n_pad, tk, compute_dtype),
        out_shape=jax.ShapeDtypeStruct((B, n_pad, C), x_flat.dtype),
        grid_spec=pltpu.PrefetchScalarGridSpec(
            num_scalar_prefetch=0,
            grid=(B, nq, nk),
            in_specs=[
                pl.BlockSpec((1, tq, C), lambda b, qi, ki: (b, qi, 0)),       # x (residual + theta)
                pl.BlockSpec((1, tk, 2 * Ci), lambda b, qi, ki: (b, ki, 0)),  # [phi | g] KV tile
                pl.BlockSpec((C, Ci), lambda b, qi, ki: (0, 0)),              # wth
                pl.BlockSpec((1, Ci), lambda b, qi, ki: (0, 0)),              # bth
                pl.BlockSpec((Ci, C), lambda b, qi, ki: (0, 0)),              # ww_eff (BN folded)
                pl.BlockSpec((1, C), lambda b, qi, ki: (0, 0)),               # bw_eff
            ],
            out_specs=pl.BlockSpec((1, tq, C), lambda b, qi, ki: (b, qi, 0)),
            scratch_shapes=[
                pltpu.VMEM((tq, 1), jnp.float32),      # running max
                pltpu.VMEM((tq, 1), jnp.float32),      # running sum
                pltpu.VMEM((tq, Ci), jnp.float32),     # output accumulator
                pltpu.VMEM((tq, Ci), compute_dtype),   # theta tile (prologue)
            ],
        ),
        compiler_params=pltpu.CompilerParams(
            dimension_semantics=("parallel", "parallel", "arbitrary"),
            vmem_limit_bytes=vmem_limit),
        cost_estimate=pl.CostEstimate(
            flops=int(B * (4 * n_pad * n_pad * Ci + 4 * n_pad * Ci * C)),
            transcendentals=int(B * n_pad * n_pad),
            bytes_accessed=int(2 * B * n_pad * C * 4
                               + B * nq * n_pad * 2 * Ci * cd_bytes),
        ),
    )(x_flat, pg, wth, bth, ww_eff, bw_eff)

    out_flat = out_flat[:, :N, :]
    return jnp.transpose(out_flat.reshape(B, H, W, C), (0, 3, 1, 2))


def init_params(key, in_channels, inter_channels):
    """Deterministic init matching the module: conv weights ~ N(0, 0.01),
    conv biases = 0, BN gamma ~ N(0, 1), BN beta = 0."""
    C, Ci = in_channels, inter_channels
    ks = jax.random.split(key, 5)
    std = 0.01
    # stored already transposed to (in, out) for channel-last matmul
    return {
        "wg":  std * jax.random.normal(ks[0], (C, Ci), jnp.float32),
        "bg":  jnp.zeros((1, Ci), jnp.float32),
        "wth": std * jax.random.normal(ks[1], (C, Ci), jnp.float32),
        "bth": jnp.zeros((1, Ci), jnp.float32),
        "wph": std * jax.random.normal(ks[2], (C, Ci), jnp.float32),
        "bph": jnp.zeros((1, Ci), jnp.float32),
        "ww":  std * jax.random.normal(ks[3], (Ci, C), jnp.float32),
        "bw":  jnp.zeros((1, C), jnp.float32),
        "gamma": jax.random.normal(ks[4], (1, C), jnp.float32),  # N(0, 1)
        "beta":  jnp.zeros((1, C), jnp.float32),
    }


def nonlocal_block_ref(x_nchw, params):
    """Pure-JAX f32 reference (same math, no Pallas) for a correctness check."""
    B, C, H, W = x_nchw.shape
    N = H * W
    x = jnp.transpose(x_nchw, (0, 2, 3, 1)).reshape(B, N, C)
    g_x = x @ params["wg"] + params["bg"]
    th = x @ params["wth"] + params["bth"]
    ph = x @ params["wph"] + params["bph"]
    f = jnp.einsum("bnc,bmc->bnm", th, ph)
    f_div_C = jax.nn.softmax(f, axis=-1)
    y = jnp.einsum("bnm,bmc->bnc", f_div_C, g_x)
    wy = y @ params["ww"] + params["bw"]
    bn = wy * (params["gamma"] / jnp.sqrt(1.0 + BN_EPS)) + params["beta"]
    z = bn + x
    return jnp.transpose(z.reshape(B, H, W, C), (0, 3, 1, 2))


if __name__ == "__main__":
    key = jax.random.PRNGKey(0)
    kx1, kx2, kp = jax.random.split(key, 3)

    B, C = 2, 4                         # in_channels=4 -> inter_channels=2
    Ci = C // 2
    params = init_params(kp, C, Ci)

    # Case 1: tile-friendly spatial size, small tiles so the multi-tile online
    # softmax path is exercised (N = 256 -> 2x2 q/kv tiles per batch element).
    x1 = jax.random.normal(kx1, (B, C, 16, 16), jnp.float32)
    z1 = jax.block_until_ready(nonlocal_block(x1, params, tile_q=128, tile_k=128))
    z1_ref = nonlocal_block_ref(x1, params)
    assert z1.shape == x1.shape
    assert jnp.allclose(z1, z1_ref, atol=2e-3, rtol=2e-3), "mismatch (case 1)"

    # Case 2: non-friendly spatial size (N = 144 -> padded to 256) exercising
    # the padded-KV masking path.
    x2 = jax.random.normal(kx2, (B, C, 12, 12), jnp.float32)
    z2 = jax.block_until_ready(nonlocal_block(x2, params, tile_q=128, tile_k=128))
    z2_ref = nonlocal_block_ref(x2, params)
    assert z2.shape == x2.shape
    assert jnp.allclose(z2, z2_ref, atol=2e-3, rtol=2e-3), "mismatch (case 2)"

    print("KERNEL_OK")
</pallas_src>

<mosaic_0001>
module attributes {stable_mosaic.version = 11 : i64} {
  func.func @kernel(%arg0: i32, %arg1: i32, %arg2: memref<1x128x4xf32, #tpu.memory_space<vmem>>, %arg3: memref<4x4xbf16, #tpu.memory_space<vmem>>, %arg4: memref<1x4xf32, #tpu.memory_space<vmem>>, %arg5: memref<1x128x4xbf16, #tpu.memory_space<vmem>>) attributes {dimension_semantics = [#tpu.dimension_semantics<parallel>, #tpu.dimension_semantics<parallel>], iteration_bounds = array<i64: 2, 2>, scalar_prefetch = 0 : i64, scratch_operands = 0 : i64, tpu.core_type = #tpu.core_type<tc>, window_params = [{transform_indices = @transform_0, window_bounds = array<i64: 1, 128, 4>}, {pipeline_mode = #tpu.pipeline_mode<synchronous>, transform_indices = @transform_1, window_bounds = array<i64: 4, 4>}, {pipeline_mode = #tpu.pipeline_mode<synchronous>, transform_indices = @transform_2, window_bounds = array<i64: 1, 4>}, {transform_indices = @transform_3, window_bounds = array<i64: 1, 128, 4>}]} {
    %c0 = arith.constant 0 : index
    %c0_0 = arith.constant 0 : index
    %c0_1 = arith.constant 0 : index
    %0 = vector.load %arg2[%c0, %c0_0, %c0_1] : memref<1x128x4xf32, #tpu.memory_space<vmem>>, vector<1x128x4xf32>
    %1 = vector.shape_cast %0 : vector<1x128x4xf32> to vector<128x4xf32>
    %2 = arith.truncf %1 : vector<128x4xf32> to vector<128x4xbf16>
    %c0_2 = arith.constant 0 : index
    %c0_3 = arith.constant 0 : index
    %3 = vector.load %arg3[%c0_2, %c0_3] : memref<4x4xbf16, #tpu.memory_space<vmem>>, vector<4x4xbf16>
    %cst = arith.constant dense<0.000000e+00> : vector<128x4xf32>
    %4 = tpu.matmul %2, %3, %cst {dimension_numbers = #tpu.dot_dimension_numbers<[1], [0], [0], [1], [0, 0, 1, 1], [], []>} : vector<128x4xbf16>, vector<4x4xbf16>, vector<128x4xf32> -> vector<128x4xf32>
    %c0_4 = arith.constant 0 : index
    %c0_5 = arith.constant 0 : index
    %5 = vector.load %arg4[%c0_4, %c0_5] : memref<1x4xf32, #tpu.memory_space<vmem>>, vector<1x4xf32>
    %6 = vector.broadcast %5 : vector<1x4xf32> to vector<128x4xf32>
    %7 = arith.addf %4, %6 : vector<128x4xf32>
    %8 = arith.truncf %7 : vector<128x4xf32> to vector<128x4xbf16>
    %c0_6 = arith.constant 0 : index
    %c0_7 = arith.constant 0 : index
    %c0_8 = arith.constant 0 : index
    %9 = vector.load %arg5[%c0_6, %c0_7, %c0_8] : memref<1x128x4xbf16, #tpu.memory_space<vmem>>, vector<1x128x4xbf16>
    %10 = vector.shape_cast %9 : vector<1x128x4xbf16> to vector<128x4xbf16>
    %11 = vector.shape_cast %8 : vector<128x4xbf16> to vector<1x128x4xbf16>
    tpu.vector_store %arg5[%c0_6, %c0_7, %c0_8], %11 {strides = array<i32>} : memref<1x128x4xbf16, #tpu.memory_space<vmem>>, vector<1x128x4xbf16>,
    return
  }
  func.func @transform_0(%arg0: i32, %arg1: i32) -> (i32, i32, i32) {
    %c0_i32 = arith.constant 0 : i32
    %c0_i32_0 = arith.constant 0 : i32
    return %arg0, %arg1, %c0_i32 : i32, i32, i32
  }
  func.func @transform_1(%arg0: i32, %arg1: i32) -> (i32, i32) {
    %c0_i32 = arith.constant 0 : i32
    %c0_i32_0 = arith.constant 0 : i32
    %c0_i32_1 = arith.constant 0 : i32
    return %c0_i32, %c0_i32_0 : i32, i32
  }
  func.func @transform_2(%arg0: i32, %arg1: i32) -> (i32, i32) {
    %c0_i32 = arith.constant 0 : i32
    %c0_i32_0 = arith.constant 0 : i32
    %c0_i32_1 = arith.constant 0 : i32
    return %c0_i32, %c0_i32_0 : i32, i32
  }
  func.func @transform_3(%arg0: i32, %arg1: i32) -> (i32, i32, i32) {
    %c0_i32 = arith.constant 0 : i32
    %c0_i32_0 = arith.constant 0 : i32
    return %arg0, %arg1, %c0_i32 : i32, i32, i32
  }
}

</mosaic_0001>

<llo_original>
// kernel: tpu_custom_call.1
$region0: #{tpu_custom_call.1}
  #allocation0 [shape = 'u32[]', space=smem, size = 0x4, offset = 0x4, fixed_abs, tag = 'smem constant byte address 0x4 - core index']
  #allocation1 [shape = 'u32[72,128]{1,0:T(1,128)}', space=vmem, size = 0x9000, scoped, tag = 'internal scratch']
  %s0 = inlined_call_operand.vmem [shape: f32[2,256,4], index: 0, kind: input, shape index: {}]
  %s1 = inlined_call_operand.vmem [shape: bf16[4,4], index: 1, kind: input, shape index: {}]
  %s2 = inlined_call_operand.vmem [shape: f32[1,4], index: 2, kind: input, shape index: {}]
  %s3 = inlined_call_operand.vmem [shape: bf16[2,256,4], index: 3, kind: output, shape index: {}]
  %s4 = sld [smem:[#allocation0]]
  $region45: #{tpu_custom_call.1} parent=0
    _
  %s6 = ssub.s32 1, %s4
  %s7 = scalar_select 0, %s6, %s4
  loop: start=0, step=1, limit=6
  $region2: #{tpu_custom_call.1} parent=0 // loop_pre_header
    _
  $region3: #{tpu_custom_call.1} parent=0 // loop_header
    %s9 = sphi 0, %s13
    %p10 = scmp.ge.s32.totalorder %s9, 6
    %s16 = sphi 0, %s28
    %s17 = sphi 0, %s24
    %s18 = sphi 0, %s16
    %s19 = sphi 0, %s17
    %s20 = sphi 0, %s18
    %s21 = sphi 0, %s19
    %s33 = sphi 0, %s35
    %s36 = sphi 0, %s33
    %s37 = sphi 0, %s36
    %s53 = sphi 0, %s37
    %s57 = sphi 0, %s57
    %s59 = sphi 0, %s57
    %s60 = sphi 0, %s59
    %s74 = sphi 0, %s60
    %s78 = sphi 0, %s78
    %s80 = sphi 0, %s78
    %s81 = sphi 0, %s80
    %s95 = sphi 0, %s81
    %s103 = sphi 0, %s105
    %s106 = sphi 0, %s103
    %s107 = sphi 0, %s106
    %s123 = sphi 0, %s107
  $region4: #{tpu_custom_call.1} parent=0 // loop_header_branch
    %12 = sbr.rel (%p10) target = $region8
  $region5: #{tpu_custom_call.1} parent=0 // loop_body
    %s14 = ssub.s32 %s9, 1
    %s15 = ssub.s32 %s9, 2
    %s22 = sadd.s32 1, %s17
    %p23 = scmp.ge.s32.totalorder %s22, 2
    %s24 = scalar_select %p23, 0, %s22
    %s25 = sadd.s32 1, %s16
    %s26 = scalar_select %p23, %s25, %s16
    %p27 = scmp.ge.s32.totalorder %s26, 2
    %s28 = scalar_select %p27, 0, %s26
    %s29 = ssub.s32 %s16, %s28
    %s30 = ssub.s32 %s17, %s24
    %s31 = sor.u32 %s29, %s30
    %p32 = scmp.eq.s32.totalorder %s31, 0
    %s34 = sadd.s32 %s33, 1
    %s35 = scalar_select %p32, %s33, %s34
    %p38 = pneg %p32
    %p39 = scmp.eq.s32.totalorder %s9, 3
    %p40 = por %p38, %p39
    %p41 = scmp.ne.s32.totalorder %s33, %s36
    %p42 = scmp.eq.s32.totalorder %s9, 0
    %p43 = por %p41, %p42
    %p44 = scmp.ne.s32.totalorder %s33, %s36
    %p45 = scmp.eq.s32.totalorder %s14, 3
    %p46 = por %p44, %p45
    %p47 = scmp.ne.s32.totalorder %s36, %s37
    %p48 = scmp.eq.s32.totalorder %s14, 0
    %p49 = por %p47, %p48
    %p50 = scmp.ne.s32.totalorder %s36, %s37
    %p51 = scmp.eq.s32.totalorder %s15, 3
    %p52 = por %p50, %p51
    %p54 = scmp.ne.s32.totalorder %s37, %s53
    %p55 = scmp.eq.s32.totalorder %s15, 0
    %p56 = por %p54, %p55
    %s58 = sadd.s32 %s57, 1
    %p61 = scmp.eq.s32.totalorder %s9, 3
    %p62 = scmp.ne.s32.totalorder %s57, %s59
    %p63 = scmp.eq.s32.totalorder %s9, 0
    %p64 = por %p62, %p63
    %p65 = scmp.ne.s32.totalorder %s57, %s59
    %p66 = scmp.eq.s32.totalorder %s14, 3
    %p67 = por %p65, %p66
    %p68 = scmp.ne.s32.totalorder %s59, %s60
    %p69 = scmp.eq.s32.totalorder %s14, 0
    %p70 = por %p68, %p69
    %p71 = scmp.ne.s32.totalorder %s59, %s60
    %p72 = scmp.eq.s32.totalorder %s15, 3
    %p73 = por %p71, %p72
    %p75 = scmp.ne.s32.totalorder %s60, %s74
    %p76 = scmp.eq.s32.totalorder %s15, 0
    %p77 = por %p75, %p76
    %s79 = sadd.s32 %s78, 1
    %p82 = scmp.eq.s32.totalorder %s9, 3
    %p83 = scmp.ne.s32.totalorder %s78, %s80
    %p84 = scmp.eq.s32.totalorder %s9, 0
    %p85 = por %p83, %p84
    %p86 = scmp.ne.s32.totalorder %s78, %s80
    %p87 = scmp.eq.s32.totalorder %s14, 3
    %p88 = por %p86, %p87
    %p89 = scmp.ne.s32.totalorder %s80, %s81
    %p90 = scmp.eq.s32.totalorder %s14, 0
    %p91 = por %p89, %p90
    %p92 = scmp.ne.s32.totalorder %s80, %s81
    %p93 = scmp.eq.s32.totalorder %s15, 3
    %p94 = por %p92, %p93
    %p96 = scmp.ne.s32.totalorder %s81, %s95
    %p97 = scmp.eq.s32.totalorder %s15, 0
    %p98 = por %p96, %p97
    %s99 = ssub.s32 %s16, %s28
    %s100 = ssub.s32 %s17, %s24
    %s101 = sor.u32 %s99, %s100
    %p102 = scmp.eq.s32.totalorder %s101, 0
    %s104 = sadd.s32 %s103, 1
    %s105 = scalar_select %p102, %s103, %s104
    %p108 = pneg %p102
    %p109 = scmp.eq.s32.totalorder %s9, 3
    %p110 = por %p108, %p109
    %p111 = scmp.ne.s32.totalorder %s103, %s106
    %p112 = scmp.eq.s32.totalorder %s9, 0
    %p113 = por %p111, %p112
    %p114 = scmp.ne.s32.totalorder %s103, %s106
    %p115 = scmp.eq.s32.totalorder %s14, 3
    %p116 = por %p114, %p115
    %p117 = scmp.ne.s32.totalorder %s106, %s107
    %p118 = scmp.eq.s32.totalorder %s14, 0
    %p119 = por %p117, %p118
    %p120 = scmp.ne.s32.totalorder %s106, %s107
    %p121 = scmp.eq.s32.totalorder %s15, 3
    %p122 = por %p120, %p121
    %p124 = scmp.ne.s32.totalorder %s107, %s123
    %p125 = scmp.eq.s32.totalorder %s15, 0
    %p126 = por %p124, %p125
    %p127 = scmp.le.s32.totalorder 1, %s9
    %p128 = scmp.lt.s32.totalorder %s9, 5
    %p129 = pnand %p127, %p128
    %p130 = pneg %p129
    // Predicated region
    $region9: #{tpu_custom_call.1} parent=5 // pred_check
      _
    $region10: #{tpu_custom_call.1} parent=5 // pred_check_branch
      %132 = sbr.rel (%p129) target = $region12
    $region11: #{tpu_custom_call.1} parent=5 // pred_region
      %s133 = ssub.s32 %s9, 1
      // Predicated region
      $region13: #{tpu_custom_call.1} parent=11 // pred_check
        %p134 = pneg %p70
      $region14: #{tpu_custom_call.1} parent=11 // pred_check_branch
        %136 = sbr.rel (%p134) target = $region16
      $region15: #{tpu_custom_call.1} parent=11 // pred_region
        _
      $region16: #{tpu_custom_call.1} parent=11 // pred_fallthru
        _
      // Predicated region
      $region17: #{tpu_custom_call.1} parent=11 // pred_check
        %p137 = pneg %p91
      $region18: #{tpu_custom_call.1} parent=11 // pred_check_branch
        %139 = sbr.rel (%p137) target = $region20
      $region19: #{tpu_custom_call.1} parent=11 // pred_region
        _
      $region20: #{tpu_custom_call.1} parent=11 // pred_fallthru
        _
    $region12: #{tpu_custom_call.1} parent=5 // pred_fallthru
      _
    %p140 = scmp.lt.s32.totalorder %s9, 4
    // Predicated region
    $region21: #{tpu_custom_call.1} parent=5 // pred_check
      %p141 = pneg %p140
    $region22: #{tpu_custom_call.1} parent=5 // pred_check_branch
      %143 = sbr.rel (%p141) target = $region24
    $region23: #{tpu_custom_call.1} parent=5 // pred_region
      // Predicated region
      $region25: #{tpu_custom_call.1} parent=23 // pred_check
        %p144 = pneg %p43
      $region26: #{tpu_custom_call.1} parent=23 // pred_check_branch
        %146 = sbr.rel (%p144) target = $region28
      $region27: #{tpu_custom_call.1} parent=23 // pred_region
        %s147 = smul.u32 16, %s17
        %p148 = scmp.lt.s32.totalorder %s16, 1
        %s149 = scalar_select %p148, %s16, 1
        %p150 = scmp.lt.s32.totalorder %s147, 31
        %s151 = scalar_select %p150, %s147, 31
        %s152 = smul.addr %s149, 32
        %s153 = sadd.s32 %s151, %s152
        %s154 = smul.addr %s153, 8
        %s155 = scalar_lea.vmem %s0, %s154
        %s156 = smul.u32 16, %s17
      $region28: #{tpu_custom_call.1} parent=23 // pred_fallthru
        _
    $region24: #{tpu_custom_call.1} parent=5 // pred_fallthru
      _
    %p157 = scmp.le.s32.totalorder 1, %s9
    %p158 = scmp.lt.s32.totalorder %s9, 5
    %p159 = pnand %p157, %p158
    %p160 = pneg %p159
    // Predicated region
    $region29: #{tpu_custom_call.1} parent=5 // pred_check
      _
    $region30: #{tpu_custom_call.1} parent=5 // pred_check_branch
      %162 = sbr.rel (%p159) target = $region32
    $region31: #{tpu_custom_call.1} parent=5 // pred_region
      %s163 = ssub.s32 %s9, 1
      %s164 = smul.u32 16, %s19
      %p165 = scmp.lt.s32.totalorder %s18, 1
      %s166 = scalar_select %p165, %s18, 1
      %p167 = scmp.lt.s32.totalorder %s164, 31
      %s168 = scalar_select %p167, %s164, 31
      %s169 = smul.addr %s166, 32
      %s170 = sadd.s32 %s168, %s169
      %s171 = smul.addr %s170, 8
      %s172 = scalar_lea.vmem %s0, %s171
      %p173 = pneg %p49
      %p174 = pneg %p46
      %p175 = pneg %p70
      %p176 = pneg %p67
      %p177 = pneg %p91
      %p178 = pneg %p88
      %p179 = pneg %p119
      %p180 = pneg %p116
      %s181 = smul.u32 16, %s19
      %p182 = scmp.lt.s32.totalorder %s18, 1
      %s183 = scalar_select %p182, %s18, 1
      %p184 = scmp.lt.s32.totalorder %s181, 31
      %s185 = scalar_select %p184, %s181, 31
      %s186 = smul.addr %s183, 32
      %s187 = sadd.s32 %s185, %s186
      %s188 = smul.addr %s187, 4
      %s189 = scalar_lea.vmem %s3, %s188
      %s190 = smul.u32 16, %s19
      %p191 = scmp.lt.s32.totalorder %s18, 1
      %s192 = scalar_select %p191, %s18, 1
      %p193 = scmp.lt.s32.totalorder %s190, 31
      %s194 = scalar_select %p193, %s190, 31
      %s195 = smul.addr %s192, 32
      %s196 = sadd.s32 %s194, %s195
      %s197 = smul.addr %s196, 8
      %s198 = scalar_lea.vmem %s0, %s197
      %s199 = smul.u32 16, %s19
      %s200 = smul.u32 16, %s19
      %p201 = scmp.lt.s32.totalorder %s18, 1
      %s202 = scalar_select %p201, %s18, 1
      %p203 = scmp.lt.s32.totalorder %s200, 31
      %s204 = scalar_select %p203, %s200, 31
      %s205 = smul.addr %s202, 32
      %s206 = sadd.s32 %s204, %s205
      %s207 = smul.addr %s206, 4
      %s208 = scalar_lea.vmem %s3, %s207
      %s209 = smul.u32 16, %s19
      %v211 = vld [vmem:[%s198] sm:$0xff]
      %v212 = vld [vmem:[%s198 + $0x8] sm:$0xff]
      %v213 = vld [vmem:[%s198 + $0x10] sm:$0xff]
      %v214 = vld [vmem:[%s198 + $0x18] sm:$0xff]
      %v215 = vld [vmem:[%s198 + $0x20] sm:$0xff]
      %v216 = vld [vmem:[%s198 + $0x28] sm:$0xff]
      %v217 = vld [vmem:[%s198 + $0x30] sm:$0xff]
      %v218 = vld [vmem:[%s198 + $0x38] sm:$0xff]
      %v219 = vld [vmem:[%s198 + $0x40] sm:$0xff]
      %v220 = vld [vmem:[%s198 + $0x48] sm:$0xff]
      %v221 = vld [vmem:[%s198 + $0x50] sm:$0xff]
      %v222 = vld [vmem:[%s198 + $0x58] sm:$0xff]
      %v223 = vld [vmem:[%s198 + $0x60] sm:$0xff]
      %v224 = vld [vmem:[%s198 + $0x68] sm:$0xff]
      %v225 = vld [vmem:[%s198 + $0x70] sm:$0xff]
      %v226 = vld [vmem:[%s198 + $0x78] sm:$0xff]
      %v227 = vpack.c.bf16 %v212, %v211
      %v228 = vpack.c.bf16 %v214, %v213
      %v229 = vpack.c.bf16 %v216, %v215
      %v230 = vpack.c.bf16 %v218, %v217
      %v231 = vpack.c.bf16 %v220, %v219
      %v232 = vpack.c.bf16 %v222, %v221
      %v233 = vpack.c.bf16 %v224, %v223
      %v234 = vpack.c.bf16 %v226, %v225
      %v235 = vld [vmem:[%s1] sm:$0x3]
      %v236 = vld [vmem:[%s2] sm:$0x1]
      %v238 = vperm.slane %v236, 0
      %vm240 = vcmask 31744
      %v242 = vsel %vm240, %v227, 0
      %v245 = vsel %vm240, %v228, 0
      %v248 = vsel %vm240, %v229, 0
      %v251 = vsel %vm240, %v230, 0
      %v254 = vsel %vm240, %v231, 0
      %v257 = vsel %vm240, %v232, 0
      %v260 = vsel %vm240, %v233, 0
      %v263 = vsel %vm240, %v234, 0
      %vm265 = vcmask 1041408
      %v267 = vsel %vm265, %v235, 0
      %269 = vmatpush.bf16.msra.mxu0 0
      %270 = vmatpush.bf16.msra.mxu0 0
      %271 = vmatpush.bf16.msra.mxu0 0
      %272 = vmatpush.bf16.msra.mxu0 0
      %273 = vmatpush.bf16.msra.mxu0 0
      %274 = vmatpush.bf16.msra.mxu0 0
      %275 = vmatpush.bf16.msra.mxu0 0
      %276 = vmatpush.bf16.msra.mxu0 %v267
      %277 = vmatmul.bf16.gmra.mxu0 %v242
      %v278 = vpop.f32.mrf.mxu0
      %v279 = vadd.f32 %v238, %v278
      %v280 = vpop.f32.mrf.mxu0
      %v281 = vadd.f32 %v238, %v280
      %282 = vmatmul.bf16.gmra.mxu0 %v245
      %v283 = vpop.f32.mrf.mxu0
      %v284 = vadd.f32 %v238, %v283
      %v285 = vpop.f32.mrf.mxu0
      %v286 = vadd.f32 %v238, %v285
      %287 = vmatmul.bf16.gmra.mxu0 %v248
      %v288 = vpop.f32.mrf.mxu0
      %v289 = vadd.f32 %v238, %v288
      %v290 = vpop.f32.mrf.mxu0
      %v291 = vadd.f32 %v238, %v290
      %292 = vmatmul.bf16.gmra.mxu0 %v251
      %v293 = vpop.f32.mrf.mxu0
      %v294 = vadd.f32 %v238, %v293
      %v295 = vpop.f32.mrf.mxu0
      %v296 = vadd.f32 %v238, %v295
      %297 = vmatmul.bf16.gmra.mxu0 %v254
      %v298 = vpop.f32.mrf.mxu0
      %v299 = vadd.f32 %v238, %v298
      %v300 = vpop.f32.mrf.mxu0
      %v301 = vadd.f32 %v238, %v300
      %302 = vmatmul.bf16.gmra.mxu0 %v257
      %v303 = vpop.f32.mrf.mxu0
      %v304 = vadd.f32 %v238, %v303
      %v305 = vpop.f32.mrf.mxu0
      %v306 = vadd.f32 %v238, %v305
      %307 = vmatmul.bf16.gmra.mxu0 %v260
      %v308 = vpop.f32.mrf.mxu0
      %v309 = vadd.f32 %v238, %v308
      %v310 = vpop.f32.mrf.mxu0
      %v311 = vadd.f32 %v238, %v310
      %312 = vmatmul.bf16.gmra.mxu0 %v263
      %v313 = vpop.f32.mrf.mxu0
      %v314 = vadd.f32 %v238, %v313
      %v315 = vpop.f32.mrf.mxu0
      %v316 = vadd.f32 %v238, %v315
      %317 = vdwg.mxu0
      %v318 = vpack.c.bf16 %v279, %v279
      %v319 = vpack.c.bf16 %v281, %v281
      %v320 = vpack.c.bf16 %v284, %v284
      %v321 = vpack.c.bf16 %v286, %v286
      %v322 = vpack.c.bf16 %v289, %v289
      %v323 = vpack.c.bf16 %v291, %v291
      %v324 = vpack.c.bf16 %v294, %v294
      %v325 = vpack.c.bf16 %v296, %v296
      %v326 = vpack.c.bf16 %v299, %v299
      %v327 = vpack.c.bf16 %v301, %v301
      %v328 = vpack.c.bf16 %v304, %v304
      %v329 = vpack.c.bf16 %v306, %v306
      %v330 = vpack.c.bf16 %v309, %v309
      %v331 = vpack.c.bf16 %v311, %v311
      %v332 = vpack.c.bf16 %v314, %v314
      %v333 = vpack.c.bf16 %v316, %v316
      %vm334 = vcmask 27648
      %335 = vst.msk [vmem:[%s208] sm:$0xf] %vm334, %v318
      %336 = vst.msk [vmem:[%s208 + $0x4] sm:$0xf] %vm334, %v319
      %337 = vst.msk [vmem:[%s208 + $0x8] sm:$0xf] %vm334, %v320
      %338 = vst.msk [vmem:[%s208 + $0xc] sm:$0xf] %vm334, %v321
      %339 = vst.msk [vmem:[%s208 + $0x10] sm:$0xf] %vm334, %v322
      %340 = vst.msk [vmem:[%s208 + $0x14] sm:$0xf] %vm334, %v323
      %341 = vst.msk [vmem:[%s208 + $0x18] sm:$0xf] %vm334, %v324
      %342 = vst.msk [vmem:[%s208 + $0x1c] sm:$0xf] %vm334, %v325
      %343 = vst.msk [vmem:[%s208 + $0x20] sm:$0xf] %vm334, %v326
      %344 = vst.msk [vmem:[%s208 + $0x24] sm:$0xf] %vm334, %v327
      %345 = vst.msk [vmem:[%s208 + $0x28] sm:$0xf] %vm334, %v328
      %346 = vst.msk [vmem:[%s208 + $0x2c] sm:$0xf] %vm334, %v329
      %347 = vst.msk [vmem:[%s208 + $0x30] sm:$0xf] %vm334, %v330
      %348 = vst.msk [vmem:[%s208 + $0x34] sm:$0xf] %vm334, %v331
      %349 = vst.msk [vmem:[%s208 + $0x38] sm:$0xf] %vm334, %v332
      %350 = vst.msk [vmem:[%s208 + $0x3c] sm:$0xf] %vm334, %v333
      %s351 = smul.u32 16, %s19
      %p352 = scmp.lt.s32.totalorder %s18, 1
      %s353 = scalar_select %p352, %s18, 1
      %p354 = scmp.lt.s32.totalorder %s351, 31
      %s355 = scalar_select %p354, %s351, 31
      %s356 = smul.addr %s353, 32
      %s357 = sadd.s32 %s355, %s356
      %s358 = smul.addr %s357, 4
      %s359 = scalar_lea.vmem %s3, %s358
      // Predicated region
      $region33: #{tpu_custom_call.1} parent=31 // pred_check
        %p360 = pneg %p116
      $region34: #{tpu_custom_call.1} parent=31 // pred_check_branch
        %362 = sbr.rel (%p360) target = $region36
      $region35: #{tpu_custom_call.1} parent=31 // pred_region
        %s363 = smul.u32 16, %s19
      $region36: #{tpu_custom_call.1} parent=31 // pred_fallthru
        _
    $region32: #{tpu_custom_call.1} parent=5 // pred_fallthru
      _
    %p364 = scmp.le.s32.totalorder 2, %s9
    // Predicated region
    $region37: #{tpu_custom_call.1} parent=5 // pred_check
      %p365 = pneg %p364
    $region38: #{tpu_custom_call.1} parent=5 // pred_check_branch
      %367 = sbr.rel (%p365) target = $region40
    $region39: #{tpu_custom_call.1} parent=5 // pred_region
      %s368 = ssub.s32 %s9, 2
      // Predicated region
      $region41: #{tpu_custom_call.1} parent=39 // pred_check
        %p369 = pneg %p122
      $region42: #{tpu_custom_call.1} parent=39 // pred_check_branch
        %371 = sbr.rel (%p369) target = $region44
      $region43: #{tpu_custom_call.1} parent=39 // pred_region
        %s372 = smul.u32 16, %s21
        %p373 = scmp.lt.s32.totalorder %s20, 1
        %s374 = scalar_select %p373, %s20, 1
        %p375 = scmp.lt.s32.totalorder %s372, 31
        %s376 = scalar_select %p375, %s372, 31
        %s377 = smul.addr %s374, 32
        %s378 = sadd.s32 %s376, %s377
        %s379 = smul.addr %s378, 4
        %s380 = scalar_lea.vmem %s3, %s379
      $region44: #{tpu_custom_call.1} parent=39 // pred_fallthru
        _
    $region40: #{tpu_custom_call.1} parent=5 // pred_fallthru
      _
  $region6: #{tpu_custom_call.1} parent=0 // loop_footer
    %s13 = sadd.s32 1, %s9
  $region7: #{tpu_custom_call.1} parent=0 // loop_footer_branch
    %8 = sbr.rel target = $region3
  $region8: #{tpu_custom_call.1} parent=0 // loop_exit
    _

</llo_original>
